<compile_context>
chip_gen: v6e
topology: v6e:2x2x1
jax: 0.10.0
libtpu: 0.0.40
codegen_flags: <defaults>
</compile_context>

<pallas_src>
import jax
import jax.numpy as jnp
from jax.experimental import pallas as pl
from jax.experimental.pallas import tpu as pltpu

LAMBDA_COORD = 5.0
LAMBDA_NOOBJ = 0.5
_TILE_M_MAX = 1024  # rows of 128 lanes per grid step:
                    # 5 * 1024 * 128 * 4B = 2.5 MiB/input/tile -> ~10 MiB with
                    # double buffering of both inputs (well under scoped VMEM).


def _round_up(x, m):
    return ((x + m - 1) // m) * m


def _loss_kernel(pred_ref, targ_ref, out_ref):
    """pred_ref/targ_ref: (5, TILE_M, 128) channel-major tiles.

    Channel rows are tx, tw, th, obj, cls.  out_ref is a (1, 1) SMEM scalar
    accumulator resident across the whole grid.
    """

    @pl.when(pl.program_id(0) == 0)
    def _():
        out_ref[0, 0] = jnp.float32(0.0)

    # Per-channel loads: each is a fully (8,128)-occupied (TILE_M, 128) slab.
    p_tx = pred_ref[0].astype(jnp.float32)
    p_tw = pred_ref[1].astype(jnp.float32)
    p_th = pred_ref[2].astype(jnp.float32)
    p_obj = pred_ref[3].astype(jnp.float32)
    p_cls = pred_ref[4].astype(jnp.float32)

    t_tx = targ_ref[0].astype(jnp.float32)
    t_tw = targ_ref[1].astype(jnp.float32)
    t_th = targ_ref[2].astype(jnp.float32)
    t_obj = targ_ref[3].astype(jnp.float32)
    t_cls = targ_ref[4].astype(jnp.float32)

    d_tx = p_tx - t_tx
    d_tw = p_tw - t_tw
    d_th = p_th - t_th

    def bce_elem(pred, targ):
        # torch.nn.BCELoss clamps the logs at -100 (also makes the 1.0-padding
        # contribute exactly 0: 0 * (-100) instead of 0 * (-inf)).
        log_p = jnp.maximum(jnp.log(pred), -100.0)
        log_1mp = jnp.maximum(jnp.log(1.0 - pred), -100.0)
        # -(t*lp + (1-t)*l1p) == -(l1p + t*(lp - l1p))  (one fewer VPU op)
        return -(log_1mp + targ * (log_p - log_1mp))

    bce_obj = bce_elem(p_obj, t_obj)          # computed once: reused obj + noobj
    bce_cls = bce_elem(p_cls, t_cls)
    noobj = (t_obj == 0.0).astype(jnp.float32)

    # NOTE: reference counts mse(pred_tx, true_tx) TWICE on purpose; ty unused.
    coord = 2.0 * (d_tx * d_tx) + d_th * d_th + d_tw * d_tw

    total = (LAMBDA_COORD * coord + bce_cls
             + (1.0 + LAMBDA_NOOBJ * noobj) * bce_obj)     # (TILE_M, 128)

    out_ref[0, 0] += jnp.sum(total)                         # single reduce/tile


@jax.jit
def yolo_loss(predictions, targets, enchors=None):
    """predictions/targets: (B, G, G, A, D) with D >= 6. enchors unused."""
    del enchors  # unused by the reference forward
    B, G1, G2, A, D = predictions.shape
    N = B * G1 * G2 * A

    pr = predictions.reshape(N, D)
    tr = targets.reshape(N, D)
    used = (0, 2, 3, 4, 5)  # tx, tw, th, obj, cls  (ty / extra class channels never read)
    # channel-major, lane-dense over N; only the used channels reach the kernel
    p5 = jnp.stack([pr[:, c] for c in used], axis=0)   # (5, N)
    t5 = jnp.stack([tr[:, c] for c in used], axis=0)

    # Fold N into (M rows, 128 lanes); round rows up to a sublane multiple of 8.
    m = _round_up(max(-(-N // 128), 1), 8)
    tile_m = min(_TILE_M_MAX, m)
    m_pad = _round_up(m, tile_m)
    n_pad = m_pad * 128
    if n_pad != N:
        # pad value 1.0 is loss-neutral: (1-1)^2 == 0, BCE(1,1) == 0, and
        # t_obj == 1 excludes padded rows from the no-object mask.
        pw = ((0, 0), (0, n_pad - N))
        p5 = jnp.pad(p5, pw, constant_values=1.0)
        t5 = jnp.pad(t5, pw, constant_values=1.0)
    p5 = p5.reshape(5, m_pad, 128)
    t5 = t5.reshape(5, m_pad, 128)

    out = pl.pallas_call(
        _loss_kernel,
        out_shape=jax.ShapeDtypeStruct((1, 1), jnp.float32),
        grid_spec=pltpu.PrefetchScalarGridSpec(
            num_scalar_prefetch=0,
            grid=(m_pad // tile_m,),
            in_specs=[
                pl.BlockSpec((5, tile_m, 128), lambda i: (0, i, 0)),
                pl.BlockSpec((5, tile_m, 128), lambda i: (0, i, 0)),
            ],
            out_specs=pl.BlockSpec((1, 1), lambda i: (0, 0),
                                   memory_space=pltpu.MemorySpace.SMEM),
        ),
        compiler_params=pltpu.CompilerParams(
            dimension_semantics=("arbitrary",),
            vmem_limit_bytes=32 * 1024 * 1024,
        ),
    )(p5, t5)
    return out[0, 0]


def _reference_loss(predictions, targets):
    # pure-JAX reference mirroring the PyTorch forward, for a sanity check
    p = predictions.astype(jnp.float32)
    t = targets.astype(jnp.float32)

    def mse(a, b):
        return jnp.sum((a - b) ** 2)

    def bce(a, b):
        lp = jnp.maximum(jnp.log(a), -100.0)
        l1p = jnp.maximum(jnp.log(1.0 - a), -100.0)
        return -(b * lp + (1.0 - b) * l1p)

    loss_coord = (mse(p[..., 0], t[..., 0]) + mse(p[..., 0], t[..., 0])
                  + mse(p[..., 3], t[..., 3]) + mse(p[..., 2], t[..., 2])) * LAMBDA_COORD
    loss_obj = jnp.sum(bce(p[..., 4], t[..., 4]))
    loss_class = jnp.sum(bce(p[..., 5], t[..., 5]))
    mask = (t[..., 4] == 0.0)
    loss_noobj = jnp.sum(jnp.where(mask, bce(p[..., 4], t[..., 4]), 0.0)) * LAMBDA_NOOBJ
    return loss_coord + loss_obj + loss_class + loss_noobj


if __name__ == "__main__":
    # small synthetic shapes: batch=2, grid=4, anchors=3, num_classes=3 -> D=8
    B, G, A, NUM_CLASSES = 2, 4, 3, 3
    D = 5 + NUM_CLASSES

    key = jax.random.PRNGKey(0)
    k_pred, k_targ, k_obj, k_anch = jax.random.split(key, 4)

    # predictions: BCE channels must lie strictly inside (0, 1)
    predictions = jax.random.uniform(
        k_pred, (B, G, G, A, D), minval=0.05, maxval=0.95, dtype=jnp.float32)

    # targets: box channels in (0,1), objectness is 0/1, class target in (0,1)
    targets = jax.random.uniform(
        k_targ, (B, G, G, A, D), minval=0.0, maxval=1.0, dtype=jnp.float32)
    obj = (jax.random.uniform(k_obj, (B, G, G, A)) > 0.7).astype(jnp.float32)
    targets = targets.at[..., 4].set(obj)

    # anchors (unused by the forward pass, kept for signature parity)
    enchors = jax.random.uniform(k_anch, (A, 2), dtype=jnp.float32)

    out = yolo_loss(predictions, targets, enchors)
    out = jax.block_until_ready(out)

    ref = _reference_loss(predictions, targets)
    assert jnp.allclose(out, ref, rtol=1e-5, atol=1e-4), (out, ref)

    print("KERNEL_OK")
</pallas_src>

<mosaic_0001>
module attributes {stable_mosaic.version = 11 : i64} {
  func.func @_loss_kernel(%arg0: i32, %arg1: memref<5x8x128xf32, #tpu.memory_space<vmem>>, %arg2: memref<5x8x128xf32, #tpu.memory_space<vmem>>, %arg3: memref<1x1xf32, #tpu.memory_space<smem>>) attributes {dimension_semantics = [#tpu.dimension_semantics<arbitrary>], iteration_bounds = array<i64: 1>, scalar_prefetch = 0 : i64, scratch_operands = 0 : i64, tpu.core_type = #tpu.core_type<tc>, window_params = [{transform_indices = @transform_0, window_bounds = array<i64: 5, 8, 128>}, {transform_indices = @transform_1, window_bounds = array<i64: 5, 8, 128>}, {transform_indices = @transform_2, window_bounds = array<i64: 1, 1>}]} {
    %c0_i32 = arith.constant 0 : i32
    %0 = arith.cmpi eq, %arg0, %c0_i32 : i32
    %1 = arith.extui %0 : i1 to i32
    %c0_i32_0 = arith.constant 0 : i32
    %2 = arith.cmpi ne, %1, %c0_i32_0 : i32
    scf.if %2 {
      %cst_43 = arith.constant 0.000000e+00 : f32
      %c0_44 = arith.constant 0 : index
      %c0_45 = arith.constant 0 : index
      %79 = memref.load %arg3[%c0_44, %c0_45] : memref<1x1xf32, #tpu.memory_space<smem>>
      memref.store %cst_43, %arg3[%c0_44, %c0_45] : memref<1x1xf32, #tpu.memory_space<smem>>
    } else {
    }
    %c0 = arith.constant 0 : index
    %c0_1 = arith.constant 0 : index
    %c0_2 = arith.constant 0 : index
    %3 = vector.load %arg1[%c0, %c0_1, %c0_2] : memref<5x8x128xf32, #tpu.memory_space<vmem>>, vector<1x8x128xf32>
    %4 = vector.shape_cast %3 : vector<1x8x128xf32> to vector<8x128xf32>
    %c1 = arith.constant 1 : index
    %c0_3 = arith.constant 0 : index
    %c0_4 = arith.constant 0 : index
    %5 = vector.load %arg1[%c1, %c0_3, %c0_4] : memref<5x8x128xf32, #tpu.memory_space<vmem>>, vector<1x8x128xf32>
    %6 = vector.shape_cast %5 : vector<1x8x128xf32> to vector<8x128xf32>
    %c2 = arith.constant 2 : index
    %c0_5 = arith.constant 0 : index
    %c0_6 = arith.constant 0 : index
    %7 = vector.load %arg1[%c2, %c0_5, %c0_6] : memref<5x8x128xf32, #tpu.memory_space<vmem>>, vector<1x8x128xf32>
    %8 = vector.shape_cast %7 : vector<1x8x128xf32> to vector<8x128xf32>
    %c3 = arith.constant 3 : index
    %c0_7 = arith.constant 0 : index
    %c0_8 = arith.constant 0 : index
    %9 = vector.load %arg1[%c3, %c0_7, %c0_8] : memref<5x8x128xf32, #tpu.memory_space<vmem>>, vector<1x8x128xf32>
    %10 = vector.shape_cast %9 : vector<1x8x128xf32> to vector<8x128xf32>
    %c4 = arith.constant 4 : index
    %c0_9 = arith.constant 0 : index
    %c0_10 = arith.constant 0 : index
    %11 = vector.load %arg1[%c4, %c0_9, %c0_10] : memref<5x8x128xf32, #tpu.memory_space<vmem>>, vector<1x8x128xf32>
    %12 = vector.shape_cast %11 : vector<1x8x128xf32> to vector<8x128xf32>
    %c0_11 = arith.constant 0 : index
    %c0_12 = arith.constant 0 : index
    %c0_13 = arith.constant 0 : index
    %13 = vector.load %arg2[%c0_11, %c0_12, %c0_13] : memref<5x8x128xf32, #tpu.memory_space<vmem>>, vector<1x8x128xf32>
    %14 = vector.shape_cast %13 : vector<1x8x128xf32> to vector<8x128xf32>
    %c1_14 = arith.constant 1 : index
    %c0_15 = arith.constant 0 : index
    %c0_16 = arith.constant 0 : index
    %15 = vector.load %arg2[%c1_14, %c0_15, %c0_16] : memref<5x8x128xf32, #tpu.memory_space<vmem>>, vector<1x8x128xf32>
    %16 = vector.shape_cast %15 : vector<1x8x128xf32> to vector<8x128xf32>
    %c2_17 = arith.constant 2 : index
    %c0_18 = arith.constant 0 : index
    %c0_19 = arith.constant 0 : index
    %17 = vector.load %arg2[%c2_17, %c0_18, %c0_19] : memref<5x8x128xf32, #tpu.memory_space<vmem>>, vector<1x8x128xf32>
    %18 = vector.shape_cast %17 : vector<1x8x128xf32> to vector<8x128xf32>
    %c3_20 = arith.constant 3 : index
    %c0_21 = arith.constant 0 : index
    %c0_22 = arith.constant 0 : index
    %19 = vector.load %arg2[%c3_20, %c0_21, %c0_22] : memref<5x8x128xf32, #tpu.memory_space<vmem>>, vector<1x8x128xf32>
    %20 = vector.shape_cast %19 : vector<1x8x128xf32> to vector<8x128xf32>
    %c4_23 = arith.constant 4 : index
    %c0_24 = arith.constant 0 : index
    %c0_25 = arith.constant 0 : index
    %21 = vector.load %arg2[%c4_23, %c0_24, %c0_25] : memref<5x8x128xf32, #tpu.memory_space<vmem>>, vector<1x8x128xf32>
    %22 = vector.shape_cast %21 : vector<1x8x128xf32> to vector<8x128xf32>
    %23 = arith.subf %4, %14 : vector<8x128xf32>
    %24 = arith.subf %6, %16 : vector<8x128xf32>
    %25 = arith.subf %8, %18 : vector<8x128xf32>
    %26 = math.log %10 : vector<8x128xf32>
    %cst = arith.constant -1.000000e+02 : f32
    %27 = vector.broadcast %cst : f32 to vector<8x128xf32>
    %28 = arith.maximumf %26, %27 : vector<8x128xf32>
    %cst_26 = arith.constant 1.000000e+00 : f32
    %29 = vector.broadcast %cst_26 : f32 to vector<8x128xf32>
    %30 = arith.subf %29, %10 : vector<8x128xf32>
    %31 = math.log %30 : vector<8x128xf32>
    %cst_27 = arith.constant -1.000000e+02 : f32
    %32 = vector.broadcast %cst_27 : f32 to vector<8x128xf32>
    %33 = arith.maximumf %31, %32 : vector<8x128xf32>
    %34 = arith.subf %28, %33 : vector<8x128xf32>
    %35 = arith.mulf %20, %34 : vector<8x128xf32>
    %36 = arith.addf %33, %35 : vector<8x128xf32>
    %cst_28 = arith.constant 0.000000e+00 : f32
    %37 = vector.broadcast %cst_28 : f32 to vector<8x128xf32>
    %38 = arith.subf %37, %36 : vector<8x128xf32>
    %39 = math.log %12 : vector<8x128xf32>
    %cst_29 = arith.constant -1.000000e+02 : f32
    %40 = vector.broadcast %cst_29 : f32 to vector<8x128xf32>
    %41 = arith.maximumf %39, %40 : vector<8x128xf32>
    %cst_30 = arith.constant 1.000000e+00 : f32
    %42 = vector.broadcast %cst_30 : f32 to vector<8x128xf32>
    %43 = arith.subf %42, %12 : vector<8x128xf32>
    %44 = math.log %43 : vector<8x128xf32>
    %cst_31 = arith.constant -1.000000e+02 : f32
    %45 = vector.broadcast %cst_31 : f32 to vector<8x128xf32>
    %46 = arith.maximumf %44, %45 : vector<8x128xf32>
    %47 = arith.subf %41, %46 : vector<8x128xf32>
    %48 = arith.mulf %22, %47 : vector<8x128xf32>
    %49 = arith.addf %46, %48 : vector<8x128xf32>
    %cst_32 = arith.constant 0.000000e+00 : f32
    %50 = vector.broadcast %cst_32 : f32 to vector<8x128xf32>
    %51 = arith.subf %50, %49 : vector<8x128xf32>
    %cst_33 = arith.constant 0.000000e+00 : f32
    %52 = vector.broadcast %cst_33 : f32 to vector<8x128xf32>
    %53 = arith.cmpf oeq, %20, %52 : vector<8x128xf32>
    %54 = arith.extui %53 : vector<8x128xi1> to vector<8x128xi32>
    %55 = arith.sitofp %54 : vector<8x128xi32> to vector<8x128xf32>
    %56 = arith.mulf %23, %23 : vector<8x128xf32>
    %cst_34 = arith.constant 2.000000e+00 : f32
    %57 = vector.broadcast %cst_34 : f32 to vector<8x128xf32>
    %58 = arith.mulf %57, %56 : vector<8x128xf32>
    %59 = arith.mulf %25, %25 : vector<8x128xf32>
    %60 = arith.addf %58, %59 : vector<8x128xf32>
    %61 = arith.mulf %24, %24 : vector<8x128xf32>
    %62 = arith.addf %60, %61 : vector<8x128xf32>
    %cst_35 = arith.constant 5.000000e+00 : f32
    %63 = vector.broadcast %cst_35 : f32 to vector<8x128xf32>
    %64 = arith.mulf %63, %62 : vector<8x128xf32>
    %65 = arith.addf %64, %51 : vector<8x128xf32>
    %cst_36 = arith.constant 5.000000e-01 : f32
    %66 = vector.broadcast %cst_36 : f32 to vector<8x128xf32>
    %67 = arith.mulf %66, %55 : vector<8x128xf32>
    %cst_37 = arith.constant 1.000000e+00 : f32
    %68 = vector.broadcast %cst_37 : f32 to vector<8x128xf32>
    %69 = arith.addf %68, %67 : vector<8x128xf32>
    %70 = arith.mulf %69, %38 : vector<8x128xf32>
    %71 = arith.addf %65, %70 : vector<8x128xf32>
    %c0_38 = arith.constant 0 : index
    %c0_39 = arith.constant 0 : index
    %72 = memref.load %arg3[%c0_38, %c0_39] : memref<1x1xf32, #tpu.memory_space<smem>>
    %73 = vector.shape_cast %71 : vector<8x128xf32> to vector<1x8x128xf32>
    %cst_40 = arith.constant dense<0.000000e+00> : vector<1xf32>
    %74 = vector.multi_reduction <add>, %73, %cst_40 [1, 2] : vector<1x8x128xf32> to vector<1xf32>
    %75 = vector.shape_cast %74 : vector<1xf32> to vector<1x1x1xf32>
    %76 = vector.extract %75[0, 0, 0] : f32 from vector<1x1x1xf32>
    %77 = arith.addf %72, %76 : f32
    %c0_41 = arith.constant 0 : index
    %c0_42 = arith.constant 0 : index
    %78 = memref.load %arg3[%c0_41, %c0_42] : memref<1x1xf32, #tpu.memory_space<smem>>
    memref.store %77, %arg3[%c0_41, %c0_42] : memref<1x1xf32, #tpu.memory_space<smem>>
    return
  }
  func.func @transform_0(%arg0: i32) -> (i32, i32, i32) {
    %c0_i32 = arith.constant 0 : i32
    %c0_i32_0 = arith.constant 0 : i32
    %c0_i32_1 = arith.constant 0 : i32
    return %c0_i32, %arg0, %c0_i32_0 : i32, i32, i32
  }
  func.func @transform_1(%arg0: i32) -> (i32, i32, i32) {
    %c0_i32 = arith.constant 0 : i32
    %c0_i32_0 = arith.constant 0 : i32
    %c0_i32_1 = arith.constant 0 : i32
    return %c0_i32, %arg0, %c0_i32_0 : i32, i32, i32
  }
  func.func @transform_2(%arg0: i32) -> (i32, i32) {
    %c0_i32 = arith.constant 0 : i32
    %c0_i32_0 = arith.constant 0 : i32
    %c0_i32_1 = arith.constant 0 : i32
    return %c0_i32, %c0_i32_0 : i32, i32
  }
}

</mosaic_0001>

<llo_original>
// kernel: yolo_loss.1
$region0: #{yolo_loss.1}
  #allocation0 [shape = 'u32[]', space=smem, size = 0x4, offset = 0x4, fixed_abs, tag = 'smem constant byte address 0x4 - core index']
  #allocation1 [shape = 'u32[144,128]{1,0:T(1,128)}', space=vmem, size = 0x12000, scoped, tag = 'internal scratch']
  %s0 = inlined_call_operand.vmem [shape: f32[5,8,128], index: 0, kind: input, shape index: {}]
  %s1 = inlined_call_operand.vmem [shape: f32[5,8,128], index: 1, kind: input, shape index: {}]
  %s2 = inlined_call_operand.hbm [shape: f32[1,1], index: 2, kind: output, shape index: {}]
  %s3 = sld [smem:[#allocation0]]
  $region22: #{yolo_loss.1} parent=0
    _
  %s5 = ssub.s32 1, %s3
  %s6 = scalar_select 0, %s5, %s3
  $region1: #{yolo_loss.1} parent=0
    #allocation2 [shape = 'u8[512]{0}', space=smem, size = 0x200, scoped, tag = 'output window, operand 0, single buffered']
    #allocation3 [shape = 's32[1]{0}', space=sflag, size = 0x4, scoped, tag = 'scoped memory for yolo_loss.1']
    %7 = vsyncpa [#allocation3], 0
    // Predicated region
    $region2: #{yolo_loss.1} parent=1 // pred_check
      _
    $region3: #{yolo_loss.1} parent=1 // pred_check_branch
      %9 = sbr.rel (0) target = $region5
    $region4: #{yolo_loss.1} parent=1 // pred_region
      _
    $region5: #{yolo_loss.1} parent=1 // pred_fallthru
      _
    // Predicated region
    $region6: #{yolo_loss.1} parent=1 // pred_check
      _
    $region7: #{yolo_loss.1} parent=1 // pred_check_branch
      %11 = sbr.rel (0) target = $region9
    $region8: #{yolo_loss.1} parent=1 // pred_region
      _
    $region9: #{yolo_loss.1} parent=1 // pred_fallthru
      _
    %p12 = scmp.eq.s32.totalorder 0, 0
    // Predicated region
    $region10: #{yolo_loss.1} parent=1 // pred_check
      %p13 = pneg %p12
    $region11: #{yolo_loss.1} parent=1 // pred_check_branch
      %15 = sbr.rel (%p13) target = $region13
    $region12: #{yolo_loss.1} parent=1 // pred_region
      %s16 = scalar_lea.smem [#allocation2], 0
      %17 = sst [smem:[%s16]] 0.0
    $region13: #{yolo_loss.1} parent=1 // pred_fallthru
      _
    %v18 = vld [vmem:[%s0] sm:$0xff]
    %s19 = scalar_lea.vmem %s0, 8
    %v20 = vld [vmem:[%s19] sm:$0xff]
    %s21 = scalar_lea.vmem %s0, 16
    %v22 = vld [vmem:[%s21] sm:$0xff]
    %s23 = scalar_lea.vmem %s0, 24
    %v24 = vld [vmem:[%s23] sm:$0xff]
    %s25 = scalar_lea.vmem %s0, 32
    %v26 = vld [vmem:[%s25] sm:$0xff]
    %v27 = vld [vmem:[%s1] sm:$0xff]
    %s28 = scalar_lea.vmem %s1, 8
    %v29 = vld [vmem:[%s28] sm:$0xff]
    %s30 = scalar_lea.vmem %s1, 16
    %v31 = vld [vmem:[%s30] sm:$0xff]
    %s32 = scalar_lea.vmem %s1, 24
    %v33 = vld [vmem:[%s32] sm:$0xff]
    %s34 = scalar_lea.vmem %s1, 32
    %v35 = vld [vmem:[%s34] sm:$0xff]
    %v36 = vsub.f32 %v18, %v27
    %v37 = vsub.f32 %v20, %v29
    %v38 = vsub.f32 %v22, %v31
    %v39 = vlog2.pop %v24
    %v40 = vmul.f32 %v39, 0.6931472
    %v41 = vmax.f32 %v40, -100.0
    %v42 = vsub.f32 1.0, %v24
    %v43 = vlog2.pop %v42
    %v44 = vmul.f32 %v43, 0.6931472
    %v45 = vmax.f32 %v44, -100.0
    %v46 = vsub.f32 %v41, %v45
    %v47 = vmul.f32 %v33, %v46
    %v48 = vadd.f32 %v45, %v47
    %v49 = vsub.f32 0.0, %v48
    %v50 = vlog2.pop %v26
    %v51 = vmul.f32 %v50, 0.6931472
    %v52 = vmax.f32 %v51, -100.0
    %v53 = vsub.f32 1.0, %v26
    %v54 = vlog2.pop %v53
    %v55 = vmul.f32 %v54, 0.6931472
    %v56 = vmax.f32 %v55, -100.0
    %v57 = vsub.f32 %v52, %v56
    %v58 = vmul.f32 %v35, %v57
    %v59 = vadd.f32 %v56, %v58
    %v60 = vsub.f32 0.0, %v59
    %vm61 = vcmp.eq.f32.partialorder %v33, 0.0
    %v62 = vsel %vm61, 1, 0
    %v63 = vcvt.s32.f32 %v62
    %v64 = vmul.f32 %v36, %v36
    %v65 = vmul.f32 %v64, 2.0
    %v66 = vmul.f32 %v38, %v38
    %v67 = vadd.f32 %v65, %v66
    %v68 = vmul.f32 %v37, %v37
    %v69 = vadd.f32 %v67, %v68
    %v70 = vmul.f32 %v69, 5.0
    %v71 = vadd.f32 %v70, %v60
    %v72 = vmul.f32 %v63, 0.5
    %v73 = vadd.f32 %v72, 1.0
    %v74 = vmul.f32 %v73, %v49
    %v75 = vadd.f32 %v71, %v74
    %s76 = sld [smem:[#allocation2]]
    %77 = vadd.xlane.f32.xlu0 %v75
    %v78 = vpop.xlane.xlu0 %77
    %v79 = vrot.slane %v78, 4
    %v80 = vadd.f32 %v78, %v79
    %v81 = vrot.slane %v80, 2
    %v82 = vadd.f32 %v80, %v81
    %v83 = vrot.slane %v82, 1
    %v84 = vadd.f32 %v82, %v83
    %s85 = vtos %v84
    %s86 = sadd.f32 %s76, %s85
    %s87 = scalar_lea.smem [#allocation2], 0
    %88 = sst [smem:[%s87]] %s86
    // Predicated region
    $region14: #{yolo_loss.1} parent=1 // pred_check
      _
    $region15: #{yolo_loss.1} parent=1 // pred_check_branch
      %90 = sbr.rel (0) target = $region17
    $region16: #{yolo_loss.1} parent=1 // pred_region
      %s92 = ssub.s32 16, 16
      %93 = vsyncadd [#allocation3], %s92
      %96 = dma.smem_to_hbm [#allocation2], 16, %s2, [#allocation3]
    $region17: #{yolo_loss.1} parent=1 // pred_fallthru
      _
    // Predicated region
    $region18: #{yolo_loss.1} parent=1 // pred_check
      _
    $region19: #{yolo_loss.1} parent=1 // pred_check_branch
      %98 = sbr.rel (0) target = $region21
    $region20: #{yolo_loss.1} parent=1 // pred_region
      %99 = dma.done [#allocation3], 16
    $region21: #{yolo_loss.1} parent=1 // pred_fallthru
      _
    %100 = sfence
    %101 = vsyncpa [#allocation3], 1

</llo_original>
